<compile_context>
chip_gen: v5e
topology: v5e:2x2
jax: 0.10.0
libtpu: 0.0.40
codegen_flags: <defaults>
</compile_context>

<pallas_src>
import jax
import jax.numpy as jnp
from jax.experimental import pallas as pl
from jax.experimental.pallas import tpu as pltpu


def _round_up(x, m):
    return ((x + m - 1) // m) * m


def _cdiv(a, b):
    return (a + b - 1) // b


def _patch_proj_kernel(x_ref, w_ref, b_ref, o_ref):
    # x_ref: (TM, K_pad) bf16 patch rows; w_ref: (K_pad, TE) bf16;
    # b_ref: (1, TE) f32; o_ref: (TM, TE) out dtype.
    acc = jnp.dot(x_ref[...], w_ref[...], preferred_element_type=jnp.float32)
    o_ref[...] = (acc + b_ref[...]).astype(o_ref.dtype)


def _vmem_capacity_bytes():
    # Generation-aware per-core VMEM capacity (v5e/v6e: 128 MiB, v7x: 64 MiB).
    try:
        return int(pltpu.get_tpu_info().vmem_capacity_bytes)
    except Exception:
        return 64 * 1024 * 1024  # conservative: smallest physical VMEM (v7x)


def _plan_tiling(M, K_pad, E_pad, x_bytes, o_bytes, w_bytes):
    """Returns (TM, M_pad, nM, TE, E_grid, nE, vmem_limit_bytes)."""
    cap = _vmem_capacity_bytes()
    budget = int(0.70 * cap)  # leave headroom for compiler internal scratch

    def fits(te, w_copies, tm):
        return (w_copies * (K_pad * te * w_bytes + te * 4)
                + 2 * tm * (K_pad * x_bytes + te * o_bytes)) <= budget

    # Embedding-dim tiling: keep the full weight VMEM-resident (single copy,
    # Buffered(1)) when it fits; otherwise stream E-tiles (double-buffered).
    tm_probe = 256
    if fits(E_pad, 1, tm_probe):
        TE = E_pad
    else:
        TE = E_pad
        while TE > 128 and not fits(TE, 2, tm_probe):
            TE = max(128, _round_up(TE // 2, 128))
    E_grid = _round_up(E_pad, TE)
    nE = E_grid // TE
    w_copies = 1 if nE == 1 else 2

    # M tiling: biggest tile the remaining budget allows, then split M into
    # near-equal 8-aligned tiles (bounded padding waste).  Keep >= 2 (even)
    # tiles when M permits so v7x megacore can shard the M axis.
    per_row = 2 * (K_pad * x_bytes + TE * o_bytes)  # double-buffered in + out
    avail = budget - w_copies * (K_pad * TE * w_bytes + TE * 4)
    tm_max = max(8, min(4096, (avail // per_row) // 8 * 8))

    n_tiles = _cdiv(M, tm_max)
    if M >= 1024:
        min_tiles = 4
    elif M >= 16:
        min_tiles = 2
    else:
        min_tiles = 1
    n_tiles = max(n_tiles, min_tiles)
    if n_tiles > 1 and n_tiles % 2:
        n_tiles += 1
    TM = _round_up(_cdiv(M, n_tiles), 8)
    M_pad = _round_up(M, TM)
    nM = M_pad // TM

    footprint = (w_copies * (K_pad * TE * w_bytes + TE * 4)
                 + 2 * TM * (K_pad * x_bytes + TE * o_bytes))
    vmem_limit = min(int(0.85 * cap),
                     max(32 * 1024 * 1024, footprint + (8 << 20)))
    return TM, M_pad, nM, TE, E_grid, nE, vmem_limit


def patch_embedding(x, weight, bias, patch_size, out_dtype=None):
    """x: (B, C, H, W) NCHW.  weight: (E, C, P, P) (PyTorch Conv2d layout).
    bias: (E,).  Returns (B, num_patches, E) == Conv2d + flatten(2).transpose(1,2)."""
    B, C, H, W = x.shape
    E = weight.shape[0]
    P = patch_size
    gh, gw = H // P, W // P
    n_patches = gh * gw
    K = C * P * P
    M = B * n_patches
    out_dtype = x.dtype if out_dtype is None else out_dtype

    # --- glue: patchify into (c, ph, pw)-ordered rows matching the flattened
    # Conv2d weight.  Cast to bf16 BEFORE the transpose so this extra HBM pass
    # moves half the bytes.
    # TODO(synk): fuse the NCHW patch extraction into the kernel's input DMA
    # (6-D BlockSpec / in-kernel reorder) to remove this HBM round-trip.
    xp = x.astype(jnp.bfloat16).reshape(B, C, gh, P, gw, P)
    xp = jnp.transpose(xp, (0, 2, 4, 1, 3, 5)).reshape(M, K)

    # Conv2d weight (E, C, P, P) -> (K, E) matmul weight (hoisted / constant-
    # folded under jit in a real module).
    w_mat = jnp.transpose(weight.reshape(E, K)).astype(jnp.bfloat16)

    # Lane/sublane-dense padding: contraction dim K and embedding dim E -> 128.
    K_pad = _round_up(K, 128)
    E_pad = _round_up(E, 128)

    x_bytes, w_bytes = 2, 2
    o_bytes = jnp.dtype(out_dtype).itemsize
    TM, M_pad, nM, TE, E_grid, nE, vmem_limit = _plan_tiling(
        M, K_pad, E_pad, x_bytes, o_bytes, w_bytes)

    xp_bf = jnp.pad(xp, ((0, M_pad - M), (0, K_pad - K)))
    w_bf = jnp.pad(w_mat, ((0, K_pad - K), (0, E_grid - E)))
    b_f32 = jnp.pad(bias.astype(jnp.float32), (0, E_grid - E)).reshape(1, E_grid)

    grid = (nM, nE)
    w_traffic = (1 if nE == 1 else nM) * K_pad * E_grid * w_bytes
    cost = pl.CostEstimate(
        flops=2 * M_pad * K_pad * E_grid,
        transcendentals=0,
        bytes_accessed=(M_pad * K_pad * x_bytes + w_traffic
                        + E_grid * 4 + M_pad * E_grid * o_bytes),
    )

    def build(single_buffer_weight):
        if single_buffer_weight:
            # Constant index_map -> one VMEM copy is enough (no refill needed).
            w_spec = pl.BlockSpec((K_pad, TE), lambda i, j: (0, j),
                                  pipeline_mode=pl.Buffered(1))
            b_spec = pl.BlockSpec((1, TE), lambda i, j: (0, j),
                                  pipeline_mode=pl.Buffered(1))
        else:
            w_spec = pl.BlockSpec((K_pad, TE), lambda i, j: (0, j))
            b_spec = pl.BlockSpec((1, TE), lambda i, j: (0, j))
        return pl.pallas_call(
            _patch_proj_kernel,
            out_shape=jax.ShapeDtypeStruct((M_pad, E_grid), out_dtype),
            grid_spec=pltpu.PrefetchScalarGridSpec(
                num_scalar_prefetch=0,
                grid=grid,
                in_specs=[
                    pl.BlockSpec((TM, K_pad), lambda i, j: (i, 0)),  # streamed rows
                    w_spec,                                          # weight
                    b_spec,                                          # bias
                ],
                out_specs=pl.BlockSpec((TM, TE), lambda i, j: (i, j)),
            ),
            compiler_params=pltpu.CompilerParams(
                dimension_semantics=("parallel", "parallel"),
                vmem_limit_bytes=vmem_limit,
            ),
            cost_estimate=cost,
        )

    try:
        out = build(single_buffer_weight=(nE == 1))(xp_bf, w_bf, b_f32)
    except Exception:
        # Fallback for environments where pipeline_mode=pl.Buffered(1) is not
        # supported on a top-level BlockSpec.
        out = build(single_buffer_weight=False)(xp_bf, w_bf, b_f32)

    # (M_pad, E_grid) -> (B, num_patches, E)
    return out[:M, :E].reshape(B, n_patches, E)


if __name__ == "__main__":
    # Small, module-consistent shapes: image 16x16, patch 4, channels 4, embed 32.
    B, C, IMG, P, E = 2, 4, 16, 4, 32

    key = jax.random.PRNGKey(0)
    kx, kw, kb = jax.random.split(key, 3)

    x = jax.random.normal(kx, (B, C, IMG, IMG), dtype=jnp.float32)
    # Conv2d-shaped synthetic parameters: (E, C, P, P) and (E,)
    weight = jax.random.normal(kw, (E, C, P, P), dtype=jnp.float32) * 0.02
    bias = jax.random.normal(kb, (E,), dtype=jnp.float32) * 0.02

    out = patch_embedding(x, weight, bias, P)
    out = jax.block_until_ready(out)

    # Plain-JAX f32 reference of the conv-as-matmul (bf16 MXU -> loosened tol).
    gh = gw = IMG // P
    xp_ref = jnp.transpose(x.reshape(B, C, gh, P, gw, P), (0, 2, 4, 1, 3, 5))
    xp_ref = xp_ref.reshape(B * gh * gw, C * P * P)
    ref = (xp_ref @ weight.reshape(E, -1).T + bias).reshape(B, gh * gw, E)

    assert out.shape == (B, gh * gw, E)
    assert jnp.allclose(out, ref, atol=2e-2, rtol=2e-2)

    print("KERNEL_OK")
</pallas_src>

<mosaic_0001>
module attributes {stable_mosaic.version = 11 : i64} {
  func.func @_patch_proj_kernel(%arg0: i32, %arg1: i32, %arg2: memref<16x128xbf16, #tpu.memory_space<vmem>>, %arg3: memref<128x128xbf16, #tpu.memory_space<vmem>>, %arg4: memref<1x128xf32, #tpu.memory_space<vmem>>, %arg5: memref<16x128xf32, #tpu.memory_space<vmem>>) attributes {dimension_semantics = [#tpu.dimension_semantics<parallel>, #tpu.dimension_semantics<parallel>], iteration_bounds = array<i64: 2, 1>, scalar_prefetch = 0 : i64, scratch_operands = 0 : i64, tpu.core_type = #tpu.core_type<tc>, window_params = [{transform_indices = @transform_0, window_bounds = array<i64: 16, 128>}, {pipeline_mode = #tpu.pipeline_mode<synchronous>, transform_indices = @transform_1, window_bounds = array<i64: 128, 128>}, {pipeline_mode = #tpu.pipeline_mode<synchronous>, transform_indices = @transform_2, window_bounds = array<i64: 1, 128>}, {transform_indices = @transform_3, window_bounds = array<i64: 16, 128>}]} {
    %c0 = arith.constant 0 : index
    %c0_0 = arith.constant 0 : index
    %0 = vector.load %arg2[%c0, %c0_0] : memref<16x128xbf16, #tpu.memory_space<vmem>>, vector<16x128xbf16>
    %c0_1 = arith.constant 0 : index
    %c0_2 = arith.constant 0 : index
    %1 = vector.load %arg3[%c0_1, %c0_2] : memref<128x128xbf16, #tpu.memory_space<vmem>>, vector<128x128xbf16>
    %cst = arith.constant dense<0.000000e+00> : vector<16x128xf32>
    %2 = tpu.matmul %0, %1, %cst {dimension_numbers = #tpu.dot_dimension_numbers<[1], [0], [0], [1], [0, 0, 1, 1], [], []>} : vector<16x128xbf16>, vector<128x128xbf16>, vector<16x128xf32> -> vector<16x128xf32>
    %c0_3 = arith.constant 0 : index
    %c0_4 = arith.constant 0 : index
    %3 = vector.load %arg4[%c0_3, %c0_4] : memref<1x128xf32, #tpu.memory_space<vmem>>, vector<1x128xf32>
    %4 = vector.broadcast %3 : vector<1x128xf32> to vector<16x128xf32>
    %5 = arith.addf %2, %4 : vector<16x128xf32>
    %c0_5 = arith.constant 0 : index
    %c0_6 = arith.constant 0 : index
    %6 = vector.load %arg5[%c0_5, %c0_6] : memref<16x128xf32, #tpu.memory_space<vmem>>, vector<16x128xf32>
    tpu.vector_store %arg5[%c0_5, %c0_6], %5 {strides = array<i32>} : memref<16x128xf32, #tpu.memory_space<vmem>>, vector<16x128xf32>,
    return
  }
  func.func @transform_0(%arg0: i32, %arg1: i32) -> (i32, i32) {
    %c0_i32 = arith.constant 0 : i32
    %c0_i32_0 = arith.constant 0 : i32
    return %arg0, %c0_i32 : i32, i32
  }
  func.func @transform_1(%arg0: i32, %arg1: i32) -> (i32, i32) {
    %c0_i32 = arith.constant 0 : i32
    %c0_i32_0 = arith.constant 0 : i32
    return %c0_i32, %arg1 : i32, i32
  }
  func.func @transform_2(%arg0: i32, %arg1: i32) -> (i32, i32) {
    %c0_i32 = arith.constant 0 : i32
    %c0_i32_0 = arith.constant 0 : i32
    return %c0_i32, %arg1 : i32, i32
  }
  func.func @transform_3(%arg0: i32, %arg1: i32) -> (i32, i32) {
    %c0_i32 = arith.constant 0 : i32
    return %arg0, %arg1 : i32, i32
  }
}

module attributes {stable_mosaic.version = 11 : i64} {
  func.func @_patch_proj_kernel(%arg0: i32, %arg1: i32, %arg2: memref<16x128xbf16, #tpu.memory_space<vmem>>, %arg3: memref<128x128xbf16, #tpu.memory_space<vmem>>, %arg4: memref<1x128xf32, #tpu.memory_space<vmem>>, %arg5: memref<16x128xf32, #tpu.memory_space<vmem>>) attributes {dimension_semantics = [#tpu.dimension_semantics<parallel>, #tpu.dimension_semantics<parallel>], iteration_bounds = array<i64: 2, 1>, scalar_prefetch = 0 : i64, scratch_operands = 0 : i64, tpu.core_type = #tpu.core_type<tc>, window_params = [{transform_indices = @transform_0, window_bounds = array<i64: 16, 128>}, {transform_indices = @transform_1, window_bounds = array<i64: 128, 128>}, {transform_indices = @transform_2, window_bounds = array<i64: 1, 128>}, {transform_indices = @transform_3, window_bounds = array<i64: 16, 128>}]} {
    %c0 = arith.constant 0 : index
    %c0_0 = arith.constant 0 : index
    %0 = vector.load %arg2[%c0, %c0_0] : memref<16x128xbf16, #tpu.memory_space<vmem>>, vector<16x128xbf16>
    %c0_1 = arith.constant 0 : index
    %c0_2 = arith.constant 0 : index
    %1 = vector.load %arg3[%c0_1, %c0_2] : memref<128x128xbf16, #tpu.memory_space<vmem>>, vector<128x128xbf16>
    %cst = arith.constant dense<0.000000e+00> : vector<16x128xf32>
    %2 = tpu.matmul %0, %1, %cst {dimension_numbers = #tpu.dot_dimension_numbers<[1], [0], [0], [1], [0, 0, 1, 1], [], []>} : vector<16x128xbf16>, vector<128x128xbf16>, vector<16x128xf32> -> vector<16x128xf32>
    %c0_3 = arith.constant 0 : index
    %c0_4 = arith.constant 0 : index
    %3 = vector.load %arg4[%c0_3, %c0_4] : memref<1x128xf32, #tpu.memory_space<vmem>>, vector<1x128xf32>
    %4 = vector.broadcast %3 : vector<1x128xf32> to vector<16x128xf32>
    %5 = arith.addf %2, %4 : vector<16x128xf32>
    %c0_5 = arith.constant 0 : index
    %c0_6 = arith.constant 0 : index
    %6 = vector.load %arg5[%c0_5, %c0_6] : memref<16x128xf32, #tpu.memory_space<vmem>>, vector<16x128xf32>
    tpu.vector_store %arg5[%c0_5, %c0_6], %5 {strides = array<i32>} : memref<16x128xf32, #tpu.memory_space<vmem>>, vector<16x128xf32>,
    return
  }
  func.func @transform_0(%arg0: i32, %arg1: i32) -> (i32, i32) {
    %c0_i32 = arith.constant 0 : i32
    %c0_i32_0 = arith.constant 0 : i32
    return %arg0, %c0_i32 : i32, i32
  }
  func.func @transform_1(%arg0: i32, %arg1: i32) -> (i32, i32) {
    %c0_i32 = arith.constant 0 : i32
    %c0_i32_0 = arith.constant 0 : i32
    return %c0_i32, %arg1 : i32, i32
  }
  func.func @transform_2(%arg0: i32, %arg1: i32) -> (i32, i32) {
    %c0_i32 = arith.constant 0 : i32
    %c0_i32_0 = arith.constant 0 : i32
    return %c0_i32, %arg1 : i32, i32
  }
  func.func @transform_3(%arg0: i32, %arg1: i32) -> (i32, i32) {
    %c0_i32 = arith.constant 0 : i32
    return %arg0, %arg1 : i32, i32
  }
}

</mosaic_0001>

<llo_original>
// kernel: tpu_custom_call.1
$region0: #{tpu_custom_call.1}
  #allocation0 [shape = 'u32[]', space=smem, size = 0x4, offset = 0x4, fixed_abs, tag = 'smem constant byte address 0x4 - core index']
  #allocation1 [shape = 'u32[72,128]{1,0:T(1,128)}', space=vmem, size = 0x9000, scoped, tag = 'internal scratch']
  %s0 = inlined_call_operand.hbm [shape: bf16[32,128], index: 0, kind: input, shape index: {}]
  %s1 = inlined_call_operand.hbm [shape: bf16[128,128], index: 1, kind: input, shape index: {}]
  %s2 = inlined_call_operand.vmem [shape: f32[1,128], index: 2, kind: input, shape index: {}]
  %s3 = inlined_call_operand.hbm [shape: f32[32,128], index: 3, kind: output, shape index: {}]
  %s4 = sld [smem:[#allocation0]]
  $region53: #{tpu_custom_call.1} parent=0
    _
  %s6 = ssub.s32 1, %s4
  %s7 = scalar_select 0, %s6, %s4
  $region1: #{tpu_custom_call.1} parent=0
    #allocation2 [shape = 'u8[8192]{0}', space=vmem, size = 0x2000, scoped, tag = 'input window, operand 0']
    #allocation3 [shape = 's32[2]{0}', space=sflag, size = 0x8, scoped, tag = 'scoped memory for tpu_custom_call.1']
    #allocation4 [shape = 's32[2]{0}', space=sflag, size = 0x8, scoped, tag = 'scoped memory for tpu_custom_call.1']
    #allocation5 [shape = 'u8[32768]{0}', space=vmem, size = 0x8000, scoped, tag = 'input window, operand 1, single buffered']
    #allocation6 [shape = 's32[1]{0}', space=sflag, size = 0x4, scoped, tag = 'scoped memory for tpu_custom_call.1']
    #allocation7 [shape = 'u8[16384]{0}', space=vmem, size = 0x4000, scoped, tag = 'output window, operand 0']
    %8 = vsyncpa [#allocation3], 0
    %s9 = scalar_lea.sflag [#allocation3], 1
    %10 = vsyncpa %s9, 0
    %11 = vsyncpa [#allocation6], 0
    %12 = vsyncpa [#allocation4], 0
    %s13 = scalar_lea.sflag [#allocation4], 1
    %14 = vsyncpa %s13, 0
    loop: start=0, step=1, limit=4
    $region2: #{tpu_custom_call.1} parent=1 // loop_pre_header
      _
    $region3: #{tpu_custom_call.1} parent=1 // loop_header
      %s16 = sphi 0, %s20
      %p17 = scmp.ge.s32.totalorder %s16, 4
      %s23 = sphi 0, %s35
      %s24 = sphi 0, %s31
      %s25 = sphi 0, %s23
      %s26 = sphi 0, %s24
      %s27 = sphi 0, %s25
      %s28 = sphi 0, %s26
      %s38 = sphi 0, %s40
      %s41 = sphi 0, %s38
      %s42 = sphi 0, %s41
      %s58 = sphi 0, %s42
      %s64 = sphi 0, %s66
      %s67 = sphi 0, %s64
      %s68 = sphi 0, %s67
      %s84 = sphi 0, %s68
      %s90 = sphi 0, %s92
      %s93 = sphi 0, %s90
      %s94 = sphi 0, %s93
      %s110 = sphi 0, %s94
      %s118 = sphi 0, %s120
      %s121 = sphi 0, %s118
      %s122 = sphi 0, %s121
      %s138 = sphi 0, %s122
    $region4: #{tpu_custom_call.1} parent=1 // loop_header_branch
      %19 = sbr.rel (%p17) target = $region8
    $region5: #{tpu_custom_call.1} parent=1 // loop_body
      %s21 = ssub.s32 %s16, 1
      %s22 = ssub.s32 %s16, 2
      %s29 = sadd.s32 1, %s24
      %p30 = scmp.ge.s32.totalorder %s29, 1
      %s31 = scalar_select %p30, 0, %s29
      %s32 = sadd.s32 1, %s23
      %s33 = scalar_select %p30, %s32, %s23
      %p34 = scmp.ge.s32.totalorder %s33, 2
      %s35 = scalar_select %p34, 0, %s33
      %s36 = ssub.s32 %s23, %s35
      %p37 = scmp.eq.s32.totalorder %s36, 0
      %s39 = sadd.s32 %s38, 1
      %s40 = scalar_select %p37, %s38, %s39
      %p43 = pneg %p37
      %p44 = scmp.eq.s32.totalorder %s16, 1
      %p45 = por %p43, %p44
      %p46 = scmp.ne.s32.totalorder %s38, %s41
      %p47 = scmp.eq.s32.totalorder %s16, 0
      %p48 = por %p46, %p47
      %p49 = scmp.ne.s32.totalorder %s38, %s41
      %p50 = scmp.eq.s32.totalorder %s21, 1
      %p51 = por %p49, %p50
      %p52 = scmp.ne.s32.totalorder %s41, %s42
      %p53 = scmp.eq.s32.totalorder %s21, 0
      %p54 = por %p52, %p53
      %p55 = scmp.ne.s32.totalorder %s41, %s42
      %p56 = scmp.eq.s32.totalorder %s22, 1
      %p57 = por %p55, %p56
      %p59 = scmp.ne.s32.totalorder %s42, %s58
      %p60 = scmp.eq.s32.totalorder %s22, 0
      %p61 = por %p59, %p60
      %s62 = ssub.s32 %s24, %s31
      %p63 = scmp.eq.s32.totalorder %s62, 0
      %s65 = sadd.s32 %s64, 1
      %s66 = scalar_select %p63, %s64, %s65
      %p69 = pneg %p63
      %p70 = scmp.eq.s32.totalorder %s16, 1
      %p71 = por %p69, %p70
      %p72 = scmp.ne.s32.totalorder %s64, %s67
      %p73 = scmp.eq.s32.totalorder %s16, 0
      %p74 = por %p72, %p73
      %p75 = scmp.ne.s32.totalorder %s64, %s67
      %p76 = scmp.eq.s32.totalorder %s21, 1
      %p77 = por %p75, %p76
      %p78 = scmp.ne.s32.totalorder %s67, %s68
      %p79 = scmp.eq.s32.totalorder %s21, 0
      %p80 = por %p78, %p79
      %p81 = scmp.ne.s32.totalorder %s67, %s68
      %p82 = scmp.eq.s32.totalorder %s22, 1
      %p83 = por %p81, %p82
      %p85 = scmp.ne.s32.totalorder %s68, %s84
      %p86 = scmp.eq.s32.totalorder %s22, 0
      %p87 = por %p85, %p86
      %s88 = ssub.s32 %s24, %s31
      %p89 = scmp.eq.s32.totalorder %s88, 0
      %s91 = sadd.s32 %s90, 1
      %s92 = scalar_select %p89, %s90, %s91
      %p95 = pneg %p89
      %p96 = scmp.eq.s32.totalorder %s16, 1
      %p97 = por %p95, %p96
      %p98 = scmp.ne.s32.totalorder %s90, %s93
      %p99 = scmp.eq.s32.totalorder %s16, 0
      %p100 = por %p98, %p99
      %p101 = scmp.ne.s32.totalorder %s90, %s93
      %p102 = scmp.eq.s32.totalorder %s21, 1
      %p103 = por %p101, %p102
      %p104 = scmp.ne.s32.totalorder %s93, %s94
      %p105 = scmp.eq.s32.totalorder %s21, 0
      %p106 = por %p104, %p105
      %p107 = scmp.ne.s32.totalorder %s93, %s94
      %p108 = scmp.eq.s32.totalorder %s22, 1
      %p109 = por %p107, %p108
      %p111 = scmp.ne.s32.totalorder %s94, %s110
      %p112 = scmp.eq.s32.totalorder %s22, 0
      %p113 = por %p111, %p112
      %s114 = ssub.s32 %s23, %s35
      %s115 = ssub.s32 %s24, %s31
      %s116 = sor.u32 %s114, %s115
      %p117 = scmp.eq.s32.totalorder %s116, 0
      %s119 = sadd.s32 %s118, 1
      %s120 = scalar_select %p117, %s118, %s119
      %p123 = pneg %p117
      %p124 = scmp.eq.s32.totalorder %s16, 1
      %p125 = por %p123, %p124
      %p126 = scmp.ne.s32.totalorder %s118, %s121
      %p127 = scmp.eq.s32.totalorder %s16, 0
      %p128 = por %p126, %p127
      %p129 = scmp.ne.s32.totalorder %s118, %s121
      %p130 = scmp.eq.s32.totalorder %s21, 1
      %p131 = por %p129, %p130
      %p132 = scmp.ne.s32.totalorder %s121, %s122
      %p133 = scmp.eq.s32.totalorder %s21, 0
      %p134 = por %p132, %p133
      %p135 = scmp.ne.s32.totalorder %s121, %s122
      %p136 = scmp.eq.s32.totalorder %s22, 1
      %p137 = por %p135, %p136
      %p139 = scmp.ne.s32.totalorder %s122, %s138
      %p140 = scmp.eq.s32.totalorder %s22, 0
      %p141 = por %p139, %p140
      %p142 = scmp.le.s32.totalorder 1, %s16
      %p143 = scmp.lt.s32.totalorder %s16, 3
      %p144 = pnand %p142, %p143
      %p145 = pneg %p144
      // Predicated region
      $region9: #{tpu_custom_call.1} parent=5 // pred_check
        _
      $region10: #{tpu_custom_call.1} parent=5 // pred_check_branch
        %147 = sbr.rel (%p144) target = $region12
      $region11: #{tpu_custom_call.1} parent=5 // pred_region
        %s148 = ssub.s32 %s16, 1
        // Predicated region
        $region13: #{tpu_custom_call.1} parent=11 // pred_check
          %p149 = pneg %p80
        $region14: #{tpu_custom_call.1} parent=11 // pred_check_branch
          %151 = sbr.rel (%p149) target = $region16
        $region15: #{tpu_custom_call.1} parent=11 // pred_region
          %153 = vsyncadd [#allocation6], 0
          %s154 = smul.addr %s26, 4
          %s155 = scalar_lea.hbm %s1, %s154
          %s156 = sshll.u32 %s155, 4
          %s157 = int_to_ptr.hbm [resolvable:$true] %s156
          %s158 = sshll.u32 [#allocation5], 4
          %s159 = int_to_ptr.vmem [resolvable:$true] %s158
          %164 = dma.hbm_to_vmem [thread:$0]  %s157, 1024, %s159, [#allocation6], 64, 64, 4
        $region16: #{tpu_custom_call.1} parent=11 // pred_fallthru
          _
        // Predicated region
        $region17: #{tpu_custom_call.1} parent=11 // pred_check
          %p165 = pneg %p106
        $region18: #{tpu_custom_call.1} parent=11 // pred_check_branch
          %167 = sbr.rel (%p165) target = $region20
        $region19: #{tpu_custom_call.1} parent=11 // pred_region
          %p168 = scmp.lt.s32.totalorder %s26, 0
          %s169 = scalar_select %p168, %s26, 0
          %s170 = scalar_lea.vmem %s2, %s169
        $region20: #{tpu_custom_call.1} parent=11 // pred_fallthru
          _
      $region12: #{tpu_custom_call.1} parent=5 // pred_fallthru
        _
      %p171 = scmp.lt.s32.totalorder %s16, 2
      // Predicated region
      $region21: #{tpu_custom_call.1} parent=5 // pred_check
        %p172 = pneg %p171
      $region22: #{tpu_custom_call.1} parent=5 // pred_check_branch
        %174 = sbr.rel (%p172) target = $region24
      $region23: #{tpu_custom_call.1} parent=5 // pred_region
        // Predicated region
        $region25: #{tpu_custom_call.1} parent=23 // pred_check
          %p175 = pneg %p48
        $region26: #{tpu_custom_call.1} parent=23 // pred_check_branch
          %177 = sbr.rel (%p175) target = $region28
        $region27: #{tpu_custom_call.1} parent=23 // pred_region
          %s178 = sand.u32 %s38, 1
          %s179 = scalar_lea.sflag [#allocation3], %s178
          %s180 = sand.u32 %s38, 1
          %s181 = smul.addr %s180, 8
          %s182 = scalar_lea.vmem [#allocation2], %s181
          %s183 = smul.u32 2, %s23
          %185 = vsyncadd %s179, 0
          %s186 = smul.addr %s183, 4
          %s187 = scalar_lea.hbm %s0, %s186
          %s188 = sshll.u32 %s187, 4
          %s189 = int_to_ptr.hbm [resolvable:$true] %s188
          %s190 = sshll.u32 %s182, 4
          %s191 = int_to_ptr.vmem [resolvable:$true] %s190
          %196 = dma.hbm_to_vmem [thread:$0]  %s189, 128, %s191, %s179, 64, 64, 4
        $region28: #{tpu_custom_call.1} parent=23 // pred_fallthru
          _
      $region24: #{tpu_custom_call.1} parent=5 // pred_fallthru
        _
      %p197 = scmp.le.s32.totalorder 1, %s16
      %p198 = scmp.lt.s32.totalorder %s16, 3
      %p199 = pnand %p197, %p198
      %p200 = pneg %p199
      // Predicated region
      $region29: #{tpu_custom_call.1} parent=5 // pred_check
        _
      $region30: #{tpu_custom_call.1} parent=5 // pred_check_branch
        %202 = sbr.rel (%p199) target = $region32
      $region31: #{tpu_custom_call.1} parent=5 // pred_region
        %s203 = ssub.s32 %s16, 1
        %s204 = sand.u32 %s41, 1
        %s205 = scalar_lea.sflag [#allocation3], %s204
        %s206 = sand.u32 %s41, 1
        %s207 = smul.addr %s206, 8
        %s208 = scalar_lea.vmem [#allocation2], %s207
        // Predicated region
        $region33: #{tpu_custom_call.1} parent=31 // pred_check
          %p209 = pneg %p54
        $region34: #{tpu_custom_call.1} parent=31 // pred_check_branch
          %211 = sbr.rel (%p209) target = $region36
        $region35: #{tpu_custom_call.1} parent=31 // pred_region
          %213 = dma.done %s205, 128
        $region36: #{tpu_custom_call.1} parent=31 // pred_fallthru
          _
        // Predicated region
        $region37: #{tpu_custom_call.1} parent=31 // pred_check
          %p214 = pneg %p80
        $region38: #{tpu_custom_call.1} parent=31 // pred_check_branch
          %216 = sbr.rel (%p214) target = $region40
        $region39: #{tpu_custom_call.1} parent=31 // pred_region
          %218 = dma.done [#allocation6], 1024
        $region40: #{tpu_custom_call.1} parent=31 // pred_fallthru
          _
        %s219 = sand.u32 %s41, 1
        %s220 = scalar_lea.sflag [#allocation3], %s219
        %s221 = sand.u32 %s41, 1
        %s222 = smul.addr %s221, 8
        %s223 = scalar_lea.vmem [#allocation2], %s222
        %p224 = pneg %p54
        %p225 = pneg %p51
        %p226 = pneg %p80
        %p227 = pneg %p77
        %p228 = scmp.lt.s32.totalorder %s26, 0
        %s229 = scalar_select %p228, %s26, 0
        %s230 = scalar_lea.vmem %s2, %s229
        %p231 = pneg %p106
        %p232 = pneg %p103
        %p233 = pneg %p134
        %p234 = pneg %p131
        %s235 = sand.u32 %s121, 1
        %s236 = scalar_lea.sflag [#allocation4], %s235
        %s237 = sand.u32 %s121, 1
        %s238 = smul.addr %s237, 16
        %s239 = scalar_lea.vmem [#allocation7], %s238
        %s240 = smul.u32 2, %s25
        %p241 = scmp.lt.s32.totalorder %s26, 0
        %s242 = scalar_select %p241, %s26, 0
        %s243 = scalar_lea.vmem %s2, %s242
        %s244 = smul.u32 2, %s25
        %v245 = vld [vmem:[%s208] sm:$0xf]
        %v246 = vld [vmem:[%s208 + $0x4] sm:$0xf]
        %v247 = vld [vmem:[#allocation5] sm:$0xf]
        %v248 = vld [vmem:[#allocation5 + $0x4] sm:$0xf]
        %v249 = vld [vmem:[#allocation5 + $0x8] sm:$0xf]
        %v250 = vld [vmem:[#allocation5 + $0xc] sm:$0xf]
        %v251 = vld [vmem:[#allocation5 + $0x10] sm:$0xf]
        %v252 = vld [vmem:[#allocation5 + $0x14] sm:$0xf]
        %v253 = vld [vmem:[#allocation5 + $0x18] sm:$0xf]
        %v254 = vld [vmem:[#allocation5 + $0x1c] sm:$0xf]
        %v255 = vld [vmem:[#allocation5 + $0x20] sm:$0xf]
        %v256 = vld [vmem:[#allocation5 + $0x24] sm:$0xf]
        %v257 = vld [vmem:[#allocation5 + $0x28] sm:$0xf]
        %v258 = vld [vmem:[#allocation5 + $0x2c] sm:$0xf]
        %v259 = vld [vmem:[#allocation5 + $0x30] sm:$0xf]
        %v260 = vld [vmem:[#allocation5 + $0x34] sm:$0xf]
        %v261 = vld [vmem:[#allocation5 + $0x38] sm:$0xf]
        %v262 = vld [vmem:[#allocation5 + $0x3c] sm:$0xf]
        %v263 = vld [vmem:[%s243] sm:$0x1]
        %v265 = vperm.slane %v263, 0
        %v269 = vunpack.c.l.b16 %v245
        %v270 = vunpack.c.l.b16 %v246
        %v271 = vpack.c.b16 %v270, %v269
        %v289 = vunpack.c.l.b16 %v247
        %v290 = vunpack.c.l.b16 %v248
        %v291 = vunpack.c.l.b16 %v249
        %v292 = vunpack.c.l.b16 %v250
        %v293 = vunpack.c.l.b16 %v251
        %v294 = vunpack.c.l.b16 %v252
        %v295 = vunpack.c.l.b16 %v253
        %v296 = vunpack.c.l.b16 %v254
        %v297 = vunpack.c.l.b16 %v255
        %v298 = vunpack.c.l.b16 %v256
        %v299 = vunpack.c.l.b16 %v257
        %v300 = vunpack.c.l.b16 %v258
        %v301 = vunpack.c.l.b16 %v259
        %v302 = vunpack.c.l.b16 %v260
        %v303 = vunpack.c.l.b16 %v261
        %v304 = vunpack.c.l.b16 %v262
        %v305 = vpack.c.b16 %v290, %v289
        %v306 = vpack.c.b16 %v292, %v291
        %v307 = vpack.c.b16 %v294, %v293
        %v308 = vpack.c.b16 %v296, %v295
        %v309 = vpack.c.b16 %v298, %v297
        %v310 = vpack.c.b16 %v300, %v299
        %v311 = vpack.c.b16 %v302, %v301
        %v312 = vpack.c.b16 %v304, %v303
        %321 = vmatpush.bf16.msra.mxu0 %v312
        %322 = vmatpush.bf16.msra.mxu0 %v311
        %323 = vmatpush.bf16.msra.mxu0 %v310
        %324 = vmatpush.bf16.msra.mxu0 %v309
        %325 = vmatpush.bf16.msra.mxu0 %v308
        %326 = vmatpush.bf16.msra.mxu0 %v307
        %327 = vmatpush.bf16.msra.mxu0 %v306
        %328 = vmatpush.bf16.msra.mxu0 %v305
        %329 = vmatmul.bf16.gmra.mxu0 %v271
        %v330 = vpop.f32.mrf.mxu0
        %v331 = vadd.f32 %v265, %v330
        %v332 = vpop.f32.mrf.mxu0
        %v333 = vadd.f32 %v265, %v332
        %334 = vdwg.mxu0
        %335 = vst [vmem:[%s239] sm:$0xff] %v331
        %336 = vst [vmem:[%s239 + $0x8] sm:$0xff] %v333
        %s337 = sand.u32 %s121, 1
        %s338 = scalar_lea.sflag [#allocation4], %s337
        %s339 = sand.u32 %s121, 1
        %s340 = smul.addr %s339, 16
        %s341 = scalar_lea.vmem [#allocation7], %s340
        // Predicated region
        $region41: #{tpu_custom_call.1} parent=31 // pred_check
          %p342 = pneg %p131
        $region42: #{tpu_custom_call.1} parent=31 // pred_check_branch
          %344 = sbr.rel (%p342) target = $region44
        $region43: #{tpu_custom_call.1} parent=31 // pred_region
          %s345 = smul.u32 2, %s25
          %347 = vsyncadd %s338, 0
          %s348 = sadd.s32 %s26, %s345
          %s349 = smul.addr %s348, 8
          %s350 = scalar_lea.hbm %s3, %s349
          %s351 = sshll.u32 %s341, 4
          %s352 = int_to_ptr.vmem [resolvable:$true] %s351
          %s353 = sshll.u32 %s350, 4
          %s354 = int_to_ptr.hbm [resolvable:$true] %s353
          %359 = dma.vmem_to_hbm [thread:$0]  %s352, 256, %s354, %s338, 128, 128, 8
        $region44: #{tpu_custom_call.1} parent=31 // pred_fallthru
          _
      $region32: #{tpu_custom_call.1} parent=5 // pred_fallthru
        _
      %p360 = scmp.le.s32.totalorder 2, %s16
      // Predicated region
      $region45: #{tpu_custom_call.1} parent=5 // pred_check
        %p361 = pneg %p360
      $region46: #{tpu_custom_call.1} parent=5 // pred_check_branch
        %363 = sbr.rel (%p361) target = $region48
      $region47: #{tpu_custom_call.1} parent=5 // pred_region
        %s364 = ssub.s32 %s16, 2
        // Predicated region
        $region49: #{tpu_custom_call.1} parent=47 // pred_check
          %p365 = pneg %p137
        $region50: #{tpu_custom_call.1} parent=47 // pred_check_branch
          %367 = sbr.rel (%p365) target = $region52
        $region51: #{tpu_custom_call.1} parent=47 // pred_region
          %s368 = sand.u32 %s122, 1
          %s369 = scalar_lea.sflag [#allocation4], %s368
          %s370 = sand.u32 %s122, 1
          %s371 = smul.addr %s370, 16
          %s372 = scalar_lea.vmem [#allocation7], %s371
          %374 = dma.done %s369, 256
        $region52: #{tpu_custom_call.1} parent=47 // pred_fallthru
          _
      $region48: #{tpu_custom_call.1} parent=5 // pred_fallthru
        _
    $region6: #{tpu_custom_call.1} parent=1 // loop_footer
      %s20 = sadd.s32 1, %s16
    $region7: #{tpu_custom_call.1} parent=1 // loop_footer_branch
      %15 = sbr.rel target = $region3
    $region8: #{tpu_custom_call.1} parent=1 // loop_exit
      _
    %375 = vsyncpa [#allocation3], 1
    %s376 = scalar_lea.sflag [#allocation3], 1
    %377 = vsyncpa %s376, 1
    %378 = vsyncpa [#allocation6], 1
    %379 = vsyncpa [#allocation4], 1
    %s380 = scalar_lea.sflag [#allocation4], 1
    %381 = vsyncpa %s380, 1

// kernel: tpu_custom_call.1
$region0: #{tpu_custom_call.1}
  #allocation0 [shape = 'u32[]', space=smem, size = 0x4, offset = 0x4, fixed_abs, tag = 'smem constant byte address 0x4 - core index']
  #allocation1 [shape = 'u32[72,128]{1,0:T(1,128)}', space=vmem, size = 0x9000, scoped, tag = 'internal scratch']
  %s0 = inlined_call_operand.hbm [shape: bf16[32,128], index: 0, kind: input, shape index: {}]
  %s1 = inlined_call_operand.hbm [shape: bf16[128,128], index: 1, kind: input, shape index: {}]
  %s2 = inlined_call_operand.vmem [shape: f32[1,128], index: 2, kind: input, shape index: {}]
  %s3 = inlined_call_operand.hbm [shape: f32[32,128], index: 3, kind: output, shape index: {}]
  %s4 = sld [smem:[#allocation0]]
  $region53: #{tpu_custom_call.1} parent=0
    _
  %s6 = ssub.s32 1, %s4
  %s7 = scalar_select 0, %s6, %s4
  $region1: #{tpu_custom_call.1} parent=0
    #allocation2 [shape = 'u8[8192]{0}', space=vmem, size = 0x2000, scoped, tag = 'input window, operand 0']
    #allocation3 [shape = 's32[2]{0}', space=sflag, size = 0x8, scoped, tag = 'scoped memory for tpu_custom_call.1']
    #allocation4 [shape = 's32[2]{0}', space=sflag, size = 0x8, scoped, tag = 'scoped memory for tpu_custom_call.1']
    #allocation5 [shape = 'u8[32768]{0}', space=vmem, size = 0x8000, scoped, tag = 'input window, operand 1, single buffered']
    #allocation6 [shape = 's32[1]{0}', space=sflag, size = 0x4, scoped, tag = 'scoped memory for tpu_custom_call.1']
    #allocation7 [shape = 'u8[16384]{0}', space=vmem, size = 0x4000, scoped, tag = 'output window, operand 0']
    %8 = vsyncpa [#allocation3], 0
    %s9 = scalar_lea.sflag [#allocation3], 1
    %10 = vsyncpa %s9, 0
    %11 = vsyncpa [#allocation6], 0
    %12 = vsyncpa [#allocation4], 0
    %s13 = scalar_lea.sflag [#allocation4], 1
    %14 = vsyncpa %s13, 0
    loop: start=0, step=1, limit=4
    $region2: #{tpu_custom_call.1} parent=1 // loop_pre_header
      _
    $region3: #{tpu_custom_call.1} parent=1 // loop_header
      %s16 = sphi 0, %s20
      %p17 = scmp.ge.s32.totalorder %s16, 4
      %s23 = sphi 0, %s35
      %s24 = sphi 0, %s31
      %s25 = sphi 0, %s23
      %s26 = sphi 0, %s24
      %s27 = sphi 0, %s25
      %s28 = sphi 0, %s26
      %s38 = sphi 0, %s40
      %s41 = sphi 0, %s38
      %s42 = sphi 0, %s41
      %s58 = sphi 0, %s42
      %s64 = sphi 0, %s66
      %s67 = sphi 0, %s64
      %s68 = sphi 0, %s67
      %s84 = sphi 0, %s68
      %s90 = sphi 0, %s92
      %s93 = sphi 0, %s90
      %s94 = sphi 0, %s93
      %s110 = sphi 0, %s94
      %s118 = sphi 0, %s120
      %s121 = sphi 0, %s118
      %s122 = sphi 0, %s121
      %s138 = sphi 0, %s122
    $region4: #{tpu_custom_call.1} parent=1 // loop_header_branch
      %19 = sbr.rel (%p17) target = $region8
    $region5: #{tpu_custom_call.1} parent=1 // loop_body
      %s21 = ssub.s32 %s16, 1
      %s22 = ssub.s32 %s16, 2
      %s29 = sadd.s32 1, %s24
      %p30 = scmp.ge.s32.totalorder %s29, 1
      %s31 = scalar_select %p30, 0, %s29
      %s32 = sadd.s32 1, %s23
      %s33 = scalar_select %p30, %s32, %s23
      %p34 = scmp.ge.s32.totalorder %s33, 2
      %s35 = scalar_select %p34, 0, %s33
      %s36 = ssub.s32 %s23, %s35
      %p37 = scmp.eq.s32.totalorder %s36, 0
      %s39 = sadd.s32 %s38, 1
      %s40 = scalar_select %p37, %s38, %s39
      %p43 = pneg %p37
      %p44 = scmp.eq.s32.totalorder %s16, 1
      %p45 = por %p43, %p44
      %p46 = scmp.ne.s32.totalorder %s38, %s41
      %p47 = scmp.eq.s32.totalorder %s16, 0
      %p48 = por %p46, %p47
      %p49 = scmp.ne.s32.totalorder %s38, %s41
      %p50 = scmp.eq.s32.totalorder %s21, 1
      %p51 = por %p49, %p50
      %p52 = scmp.ne.s32.totalorder %s41, %s42
      %p53 = scmp.eq.s32.totalorder %s21, 0
      %p54 = por %p52, %p53
      %p55 = scmp.ne.s32.totalorder %s41, %s42
      %p56 = scmp.eq.s32.totalorder %s22, 1
      %p57 = por %p55, %p56
      %p59 = scmp.ne.s32.totalorder %s42, %s58
      %p60 = scmp.eq.s32.totalorder %s22, 0
      %p61 = por %p59, %p60
      %s62 = ssub.s32 %s24, %s31
      %p63 = scmp.eq.s32.totalorder %s62, 0
      %s65 = sadd.s32 %s64, 1
      %s66 = scalar_select %p63, %s64, %s65
      %p69 = pneg %p63
      %p70 = scmp.eq.s32.totalorder %s16, 1
      %p71 = por %p69, %p70
      %p72 = scmp.ne.s32.totalorder %s64, %s67
      %p73 = scmp.eq.s32.totalorder %s16, 0
      %p74 = por %p72, %p73
      %p75 = scmp.ne.s32.totalorder %s64, %s67
      %p76 = scmp.eq.s32.totalorder %s21, 1
      %p77 = por %p75, %p76
      %p78 = scmp.ne.s32.totalorder %s67, %s68
      %p79 = scmp.eq.s32.totalorder %s21, 0
      %p80 = por %p78, %p79
      %p81 = scmp.ne.s32.totalorder %s67, %s68
      %p82 = scmp.eq.s32.totalorder %s22, 1
      %p83 = por %p81, %p82
      %p85 = scmp.ne.s32.totalorder %s68, %s84
      %p86 = scmp.eq.s32.totalorder %s22, 0
      %p87 = por %p85, %p86
      %s88 = ssub.s32 %s24, %s31
      %p89 = scmp.eq.s32.totalorder %s88, 0
      %s91 = sadd.s32 %s90, 1
      %s92 = scalar_select %p89, %s90, %s91
      %p95 = pneg %p89
      %p96 = scmp.eq.s32.totalorder %s16, 1
      %p97 = por %p95, %p96
      %p98 = scmp.ne.s32.totalorder %s90, %s93
      %p99 = scmp.eq.s32.totalorder %s16, 0
      %p100 = por %p98, %p99
      %p101 = scmp.ne.s32.totalorder %s90, %s93
      %p102 = scmp.eq.s32.totalorder %s21, 1
      %p103 = por %p101, %p102
      %p104 = scmp.ne.s32.totalorder %s93, %s94
      %p105 = scmp.eq.s32.totalorder %s21, 0
      %p106 = por %p104, %p105
      %p107 = scmp.ne.s32.totalorder %s93, %s94
      %p108 = scmp.eq.s32.totalorder %s22, 1
      %p109 = por %p107, %p108
      %p111 = scmp.ne.s32.totalorder %s94, %s110
      %p112 = scmp.eq.s32.totalorder %s22, 0
      %p113 = por %p111, %p112
      %s114 = ssub.s32 %s23, %s35
      %s115 = ssub.s32 %s24, %s31
      %s116 = sor.u32 %s114, %s115
      %p117 = scmp.eq.s32.totalorder %s116, 0
      %s119 = sadd.s32 %s118, 1
      %s120 = scalar_select %p117, %s118, %s119
      %p123 = pneg %p117
      %p124 = scmp.eq.s32.totalorder %s16, 1
      %p125 = por %p123, %p124
      %p126 = scmp.ne.s32.totalorder %s118, %s121
      %p127 = scmp.eq.s32.totalorder %s16, 0
      %p128 = por %p126, %p127
      %p129 = scmp.ne.s32.totalorder %s118, %s121
      %p130 = scmp.eq.s32.totalorder %s21, 1
      %p131 = por %p129, %p130
      %p132 = scmp.ne.s32.totalorder %s121, %s122
      %p133 = scmp.eq.s32.totalorder %s21, 0
      %p134 = por %p132, %p133
      %p135 = scmp.ne.s32.totalorder %s121, %s122
      %p136 = scmp.eq.s32.totalorder %s22, 1
      %p137 = por %p135, %p136
      %p139 = scmp.ne.s32.totalorder %s122, %s138
      %p140 = scmp.eq.s32.totalorder %s22, 0
      %p141 = por %p139, %p140
      %p142 = scmp.le.s32.totalorder 1, %s16
      %p143 = scmp.lt.s32.totalorder %s16, 3
      %p144 = pnand %p142, %p143
      %p145 = pneg %p144
      // Predicated region
      $region9: #{tpu_custom_call.1} parent=5 // pred_check
        _
      $region10: #{tpu_custom_call.1} parent=5 // pred_check_branch
        %147 = sbr.rel (%p144) target = $region12
      $region11: #{tpu_custom_call.1} parent=5 // pred_region
        %s148 = ssub.s32 %s16, 1
        // Predicated region
        $region13: #{tpu_custom_call.1} parent=11 // pred_check
          %p149 = pneg %p80
        $region14: #{tpu_custom_call.1} parent=11 // pred_check_branch
          %151 = sbr.rel (%p149) target = $region16
        $region15: #{tpu_custom_call.1} parent=11 // pred_region
          %153 = vsyncadd [#allocation6], 0
          %s154 = smul.addr %s26, 4
          %s155 = scalar_lea.hbm %s1, %s154
          %s156 = sshll.u32 %s155, 4
          %s157 = int_to_ptr.hbm [resolvable:$true] %s156
          %s158 = sshll.u32 [#allocation5], 4
          %s159 = int_to_ptr.vmem [resolvable:$true] %s158
          %164 = dma.hbm_to_vmem [thread:$0]  %s157, 1024, %s159, [#allocation6], 64, 64, 4
        $region16: #{tpu_custom_call.1} parent=11 // pred_fallthru
          _
        // Predicated region
        $region17: #{tpu_custom_call.1} parent=11 // pred_check
          %p165 = pneg %p106
        $region18: #{tpu_custom_call.1} parent=11 // pred_check_branch
          %167 = sbr.rel (%p165) target = $region20
        $region19: #{tpu_custom_call.1} parent=11 // pred_region
          %p168 = scmp.lt.s32.totalorder %s26, 0
          %s169 = scalar_select %p168, %s26, 0
          %s170 = scalar_lea.vmem %s2, %s169
        $region20: #{tpu_custom_call.1} parent=11 // pred_fallthru
          _
      $region12: #{tpu_custom_call.1} parent=5 // pred_fallthru
        _
      %p171 = scmp.lt.s32.totalorder %s16, 2
      // Predicated region
      $region21: #{tpu_custom_call.1} parent=5 // pred_check
        %p172 = pneg %p171
      $region22: #{tpu_custom_call.1} parent=5 // pred_check_branch
        %174 = sbr.rel (%p172) target = $region24
      $region23: #{tpu_custom_call.1} parent=5 // pred_region
        // Predicated region
        $region25: #{tpu_custom_call.1} parent=23 // pred_check
          %p175 = pneg %p48
        $region26: #{tpu_custom_call.1} parent=23 // pred_check_branch
          %177 = sbr.rel (%p175) target = $region28
        $region27: #{tpu_custom_call.1} parent=23 // pred_region
          %s178 = sand.u32 %s38, 1
          %s179 = scalar_lea.sflag [#allocation3], %s178
          %s180 = sand.u32 %s38, 1
          %s181 = smul.addr %s180, 8
          %s182 = scalar_lea.vmem [#allocation2], %s181
          %s183 = smul.u32 2, %s23
          %185 = vsyncadd %s179, 0
          %s186 = smul.addr %s183, 4
          %s187 = scalar_lea.hbm %s0, %s186
          %s188 = sshll.u32 %s187, 4
          %s189 = int_to_ptr.hbm [resolvable:$true] %s188
          %s190 = sshll.u32 %s182, 4
          %s191 = int_to_ptr.vmem [resolvable:$true] %s190
          %196 = dma.hbm_to_vmem [thread:$0]  %s189, 128, %s191, %s179, 64, 64, 4
        $region28: #{tpu_custom_call.1} parent=23 // pred_fallthru
          _
      $region24: #{tpu_custom_call.1} parent=5 // pred_fallthru
        _
      %p197 = scmp.le.s32.totalorder 1, %s16
      %p198 = scmp.lt.s32.totalorder %s16, 3
      %p199 = pnand %p197, %p198
      %p200 = pneg %p199
      // Predicated region
      $region29: #{tpu_custom_call.1} parent=5 // pred_check
        _
      $region30: #{tpu_custom_call.1} parent=5 // pred_check_branch
        %202 = sbr.rel (%p199) target = $region32
      $region31: #{tpu_custom_call.1} parent=5 // pred_region
        %s203 = ssub.s32 %s16, 1
        %s204 = sand.u32 %s41, 1
        %s205 = scalar_lea.sflag [#allocation3], %s204
        %s206 = sand.u32 %s41, 1
        %s207 = smul.addr %s206, 8
        %s208 = scalar_lea.vmem [#allocation2], %s207
        // Predicated region
        $region33: #{tpu_custom_call.1} parent=31 // pred_check
          %p209 = pneg %p54
        $region34: #{tpu_custom_call.1} parent=31 // pred_check_branch
          %211 = sbr.rel (%p209) target = $region36
        $region35: #{tpu_custom_call.1} parent=31 // pred_region
          %213 = dma.done %s205, 128
        $region36: #{tpu_custom_call.1} parent=31 // pred_fallthru
          _
        // Predicated region
        $region37: #{tpu_custom_call.1} parent=31 // pred_check
          %p214 = pneg %p80
        $region38: #{tpu_custom_call.1} parent=31 // pred_check_branch
          %216 = sbr.rel (%p214) target = $region40
        $region39: #{tpu_custom_call.1} parent=31 // pred_region
          %218 = dma.done [#allocation6], 1024
        $region40: #{tpu_custom_call.1} parent=31 // pred_fallthru
          _
        %s219 = sand.u32 %s41, 1
        %s220 = scalar_lea.sflag [#allocation3], %s219
        %s221 = sand.u32 %s41, 1
        %s222 = smul.addr %s221, 8
        %s223 = scalar_lea.vmem [#allocation2], %s222
        %p224 = pneg %p54
        %p225 = pneg %p51
        %p226 = pneg %p80
        %p227 = pneg %p77
        %p228 = scmp.lt.s32.totalorder %s26, 0
        %s229 = scalar_select %p228, %s26, 0
        %s230 = scalar_lea.vmem %s2, %s229
        %p231 = pneg %p106
        %p232 = pneg %p103
        %p233 = pneg %p134
        %p234 = pneg %p131
        %s235 = sand.u32 %s121, 1
        %s236 = scalar_lea.sflag [#allocation4], %s235
        %s237 = sand.u32 %s121, 1
        %s238 = smul.addr %s237, 16
        %s239 = scalar_lea.vmem [#allocation7], %s238
        %s240 = smul.u32 2, %s25
        %p241 = scmp.lt.s32.totalorder %s26, 0
        %s242 = scalar_select %p241, %s26, 0
        %s243 = scalar_lea.vmem %s2, %s242
        %s244 = smul.u32 2, %s25
        %v245 = vld [vmem:[%s208] sm:$0xf]
        %v246 = vld [vmem:[%s208 + $0x4] sm:$0xf]
        %v247 = vld [vmem:[#allocation5] sm:$0xf]
        %v248 = vld [vmem:[#allocation5 + $0x4] sm:$0xf]
        %v249 = vld [vmem:[#allocation5 + $0x8] sm:$0xf]
        %v250 = vld [vmem:[#allocation5 + $0xc] sm:$0xf]
        %v251 = vld [vmem:[#allocation5 + $0x10] sm:$0xf]
        %v252 = vld [vmem:[#allocation5 + $0x14] sm:$0xf]
        %v253 = vld [vmem:[#allocation5 + $0x18] sm:$0xf]
        %v254 = vld [vmem:[#allocation5 + $0x1c] sm:$0xf]
        %v255 = vld [vmem:[#allocation5 + $0x20] sm:$0xf]
        %v256 = vld [vmem:[#allocation5 + $0x24] sm:$0xf]
        %v257 = vld [vmem:[#allocation5 + $0x28] sm:$0xf]
        %v258 = vld [vmem:[#allocation5 + $0x2c] sm:$0xf]
        %v259 = vld [vmem:[#allocation5 + $0x30] sm:$0xf]
        %v260 = vld [vmem:[#allocation5 + $0x34] sm:$0xf]
        %v261 = vld [vmem:[#allocation5 + $0x38] sm:$0xf]
        %v262 = vld [vmem:[#allocation5 + $0x3c] sm:$0xf]
        %v263 = vld [vmem:[%s243] sm:$0x1]
        %v265 = vperm.slane %v263, 0
        %v269 = vunpack.c.l.b16 %v245
        %v270 = vunpack.c.l.b16 %v246
        %v271 = vpack.c.b16 %v270, %v269
        %v289 = vunpack.c.l.b16 %v247
        %v290 = vunpack.c.l.b16 %v248
        %v291 = vunpack.c.l.b16 %v249
        %v292 = vunpack.c.l.b16 %v250
        %v293 = vunpack.c.l.b16 %v251
        %v294 = vunpack.c.l.b16 %v252
        %v295 = vunpack.c.l.b16 %v253
        %v296 = vunpack.c.l.b16 %v254
        %v297 = vunpack.c.l.b16 %v255
        %v298 = vunpack.c.l.b16 %v256
        %v299 = vunpack.c.l.b16 %v257
        %v300 = vunpack.c.l.b16 %v258
        %v301 = vunpack.c.l.b16 %v259
        %v302 = vunpack.c.l.b16 %v260
        %v303 = vunpack.c.l.b16 %v261
        %v304 = vunpack.c.l.b16 %v262
        %v305 = vpack.c.b16 %v290, %v289
        %v306 = vpack.c.b16 %v292, %v291
        %v307 = vpack.c.b16 %v294, %v293
        %v308 = vpack.c.b16 %v296, %v295
        %v309 = vpack.c.b16 %v298, %v297
        %v310 = vpack.c.b16 %v300, %v299
        %v311 = vpack.c.b16 %v302, %v301
        %v312 = vpack.c.b16 %v304, %v303
        %321 = vmatpush.bf16.msra.mxu0 %v312
        %322 = vmatpush.bf16.msra.mxu0 %v311
        %323 = vmatpush.bf16.msra.mxu0 %v310
        %324 = vmatpush.bf16.msra.mxu0 %v309
        %325 = vmatpush.bf16.msra.mxu0 %v308
        %326 = vmatpush.bf16.msra.mxu0 %v307
        %327 = vmatpush.bf16.msra.mxu0 %v306
        %328 = vmatpush.bf16.msra.mxu0 %v305
        %329 = vmatmul.bf16.gmra.mxu0 %v271
        %v330 = vpop.f32.mrf.mxu0
        %v331 = vadd.f32 %v265, %v330
        %v332 = vpop.f32.mrf.mxu0
        %v333 = vadd.f32 %v265, %v332
        %334 = vdwg.mxu0
        %335 = vst [vmem:[%s239] sm:$0xff] %v331
        %336 = vst [vmem:[%s239 + $0x8] sm:$0xff] %v333
        %s337 = sand.u32 %s121, 1
        %s338 = scalar_lea.sflag [#allocation4], %s337
        %s339 = sand.u32 %s121, 1
        %s340 = smul.addr %s339, 16
        %s341 = scalar_lea.vmem [#allocation7], %s340
        // Predicated region
        $region41: #{tpu_custom_call.1} parent=31 // pred_check
          %p342 = pneg %p131
        $region42: #{tpu_custom_call.1} parent=31 // pred_check_branch
          %344 = sbr.rel (%p342) target = $region44
        $region43: #{tpu_custom_call.1} parent=31 // pred_region
          %s345 = smul.u32 2, %s25
          %347 = vsyncadd %s338, 0
          %s348 = sadd.s32 %s26, %s345
          %s349 = smul.addr %s348, 8
          %s350 = scalar_lea.hbm %s3, %s349
          %s351 = sshll.u32 %s341, 4
          %s352 = int_to_ptr.vmem [resolvable:$true] %s351
          %s353 = sshll.u32 %s350, 4
          %s354 = int_to_ptr.hbm [resolvable:$true] %s353
          %359 = dma.vmem_to_hbm [thread:$0]  %s352, 256, %s354, %s338, 128, 128, 8
        $region44: #{tpu_custom_call.1} parent=31 // pred_fallthru
          _
      $region32: #{tpu_custom_call.1} parent=5 // pred_fallthru
        _
      %p360 = scmp.le.s32.totalorder 2, %s16
      // Predicated region
      $region45: #{tpu_custom_call.1} parent=5 // pred_check
        %p361 = pneg %p360
      $region46: #{tpu_custom_call.1} parent=5 // pred_check_branch
        %363 = sbr.rel (%p361) target = $region48
      $region47: #{tpu_custom_call.1} parent=5 // pred_region
        %s364 = ssub.s32 %s16, 2
        // Predicated region
        $region49: #{tpu_custom_call.1} parent=47 // pred_check
          %p365 = pneg %p137
        $region50: #{tpu_custom_call.1} parent=47 // pred_check_branch
          %367 = sbr.rel (%p365) target = $region52
        $region51: #{tpu_custom_call.1} parent=47 // pred_region
          %s368 = sand.u32 %s122, 1
          %s369 = scalar_lea.sflag [#allocation4], %s368
          %s370 = sand.u32 %s122, 1
          %s371 = smul.addr %s370, 16
          %s372 = scalar_lea.vmem [#allocation7], %s371
          %374 = dma.done %s369, 256
        $region52: #{tpu_custom_call.1} parent=47 // pred_fallthru
          _
      $region48: #{tpu_custom_call.1} parent=5 // pred_fallthru
        _
    $region6: #{tpu_custom_call.1} parent=1 // loop_footer
      %s20 = sadd.s32 1, %s16
    $region7: #{tpu_custom_call.1} parent=1 // loop_footer_branch
      %15 = sbr.rel target = $region3
    $region8: #{tpu_custom_call.1} parent=1 // loop_exit
      _
    %375 = vsyncpa [#allocation3], 1
    %s376 = scalar_lea.sflag [#allocation3], 1
    %377 = vsyncpa %s376, 1
    %378 = vsyncpa [#allocation6], 1
    %379 = vsyncpa [#allocation4], 1
    %s380 = scalar_lea.sflag [#allocation4], 1
    %381 = vsyncpa %s380, 1

</llo_original>
